<compile_context>
chip_gen: v6e
topology: v6e:2x2x1
jax: 0.10.0
libtpu: 0.0.40
codegen_flags: <defaults>
</compile_context>

<pallas_src>
import jax
import jax.numpy as jnp
from jax.experimental import pallas as pl
from jax.experimental.pallas import tpu as pltpu


_TARGET_TILE_BYTES = 1 << 20  # ~1 MiB per input tile: good HBM-roofline point.


def _choose_tile_h(h: int, w: int, itemsize: int) -> int:
    """Largest H-tile that (a) divides H, (b) is a multiple of 8 (sublane) or
    equals H, and (c) keeps one (TILE_H, W) tile near _TARGET_TILE_BYTES."""
    target_rows = max(8, _TARGET_TILE_BYTES // max(1, w * itemsize))
    if h <= target_rows:
        return h
    best = h  # fall back to the full column if no aligned divisor exists
    t = 8
    while t <= target_rows:
        if h % t == 0:
            best = t
        t += 8
    return best


def _tv_loss_kernel(x_ref, o_ref, acc_h_ref, acc_v_ref, row_ref):
    b_idx = pl.program_id(0)          # image/channel index (N*C axis)
    h_idx = pl.program_id(1)          # H-tile index (fastest grid axis)
    is_first = jnp.logical_and(b_idx == 0, h_idx == 0)
    is_last = jnp.logical_and(
        b_idx == pl.num_programs(0) - 1, h_idx == pl.num_programs(1) - 1
    )

    @pl.when(is_first)
    def _init():
        acc_h_ref[...] = jnp.zeros_like(acc_h_ref)
        acc_v_ref[...] = jnp.zeros_like(acc_v_ref)

    xf = x_ref[0].astype(jnp.float32)          # (TILE_H, W), cast per tile
    tile_h, w = xf.shape                       # static Python ints

    # Horizontal (width-axis) diffs: fully contained inside the tile.
    if w > 1:
        acc_h_ref[...] += jnp.sum(jnp.abs(xf[:, :-1] - xf[:, 1:]))

    # Vertical (height-axis) diffs inside the tile.
    if tile_h > 1:
        acc_v_ref[...] += jnp.sum(jnp.abs(xf[:-1, :] - xf[1:, :]))

    # Vertical diff across the boundary with the previous H-tile of the same
    # image, using the last row carried from the previous grid step.  At
    # h_idx == 0 (new image) the carried row is ignored, so no cross-image
    # terms leak in.
    @pl.when(h_idx > 0)
    def _tile_boundary():
        acc_v_ref[...] += jnp.sum(jnp.abs(row_ref[...] - xf[0:1, :]))

    # Carry this tile's last row for the next step's boundary term.
    row_ref[...] = xf[tile_h - 1:tile_h, :]

    # Epilogue: combine the two sums and write the scalar once.
    @pl.when(is_last)
    def _finalize():
        sh = acc_h_ref[...]
        sv = acc_v_ref[...]
        o_ref[...] = jnp.sqrt(sh * sh + sv * sv).astype(o_ref.dtype)


def tv_loss(x: jax.Array, *, tile_h=None) -> jax.Array:
    """Compute TVLoss on an NCHW tensor, returning a scalar (float32)."""
    n, c, h, w = x.shape
    b = n * c
    x3 = x.reshape(b, h, w)   # NCHW is contiguous, so this is a free reshape

    if tile_h is None:
        tile_h = _choose_tile_h(h, w, x.dtype.itemsize)
    assert h % tile_h == 0 and (tile_h % 8 == 0 or tile_h == h), (h, tile_h)

    grid = (b, h // tile_h)   # H-tile axis last => consecutive within an image

    # Advisory cost hint for XLA scheduling: ~2x(sub+abs+add) per element,
    # one sqrt, and one pass over the input.
    flops = 6 * b * h * w
    bytes_accessed = x.size * x.dtype.itemsize + 4

    out = pl.pallas_call(
        _tv_loss_kernel,
        out_shape=jax.ShapeDtypeStruct((1, 1), jnp.float32),
        grid_spec=pltpu.PrefetchScalarGridSpec(
            num_scalar_prefetch=0,
            grid=grid,
            in_specs=[pl.BlockSpec((1, tile_h, w), lambda i, j: (i, j, 0))],
            out_specs=pl.BlockSpec((1, 1), lambda i, j: (0, 0)),
            scratch_shapes=[
                pltpu.VMEM((1, 1), jnp.float32),   # running sum of horizontal |diff|
                pltpu.VMEM((1, 1), jnp.float32),   # running sum of vertical   |diff|
                pltpu.VMEM((1, w), jnp.float32),   # carried last row of prev tile
            ],
        ),
        compiler_params=pltpu.CompilerParams(
            # Scalar accumulator carried across every step => serial grid.
            dimension_semantics=("arbitrary", "arbitrary"),
        ),
        cost_estimate=pl.CostEstimate(
            flops=flops, transcendentals=1, bytes_accessed=bytes_accessed
        ),
    )(x3)
    return out[0, 0]


def tv_loss_ref(x: jax.Array) -> jax.Array:
    """Pure-JAX reference matching the PyTorch forward."""
    xf = x.astype(jnp.float32)
    s_h = jnp.sum(jnp.abs(xf[:, :, :, :-1] - xf[:, :, :, 1:]))
    s_v = jnp.sum(jnp.abs(xf[:, :, :-1, :] - xf[:, :, 1:, :]))
    return jnp.sqrt(s_h ** 2 + s_v ** 2)


if __name__ == "__main__":
    key = jax.random.PRNGKey(0)

    # Primary shape implied by the module spec (NCHW).
    x = jax.random.normal(key, (2, 4, 16, 16), dtype=jnp.float32)
    out = tv_loss(x)
    jax.block_until_ready(out)
    ref = tv_loss_ref(x)
    assert jnp.allclose(out, ref, rtol=1e-5, atol=1e-5), (out, ref)

    # Also exercise the H-tiled path (cross-tile vertical boundary carry).
    x2 = jax.random.normal(jax.random.PRNGKey(1), (2, 3, 32, 128), dtype=jnp.float32)
    out2 = tv_loss(x2, tile_h=8)
    jax.block_until_ready(out2)
    ref2 = tv_loss_ref(x2)
    assert jnp.allclose(out2, ref2, rtol=1e-4, atol=1e-4), (out2, ref2)

    print("KERNEL_OK")
</pallas_src>

<mosaic_0001>
module attributes {stable_mosaic.version = 11 : i64} {
  func.func @_tv_loss_kernel(%arg0: i32, %arg1: i32, %arg2: memref<1x16x16xf32, #tpu.memory_space<vmem>>, %arg3: memref<1x1xf32, #tpu.memory_space<vmem>>, %arg4: memref<1x1xf32, #tpu.memory_space<vmem>>, %arg5: memref<1x1xf32, #tpu.memory_space<vmem>>, %arg6: memref<1x16xf32, #tpu.memory_space<vmem>>) attributes {dimension_semantics = [#tpu.dimension_semantics<arbitrary>, #tpu.dimension_semantics<arbitrary>], iteration_bounds = array<i64: 8, 1>, scalar_prefetch = 0 : i64, scratch_operands = 3 : i64, tpu.core_type = #tpu.core_type<tc>, window_params = [{transform_indices = @transform_0, window_bounds = array<i64: 1, 16, 16>}, {pipeline_mode = #tpu.pipeline_mode<synchronous>, transform_indices = @transform_1, window_bounds = array<i64: 1, 1>}]} {
    %c0_i32 = arith.constant 0 : i32
    %0 = arith.cmpi eq, %arg0, %c0_i32 : i32
    %c0_i32_0 = arith.constant 0 : i32
    %1 = arith.cmpi eq, %arg1, %c0_i32_0 : i32
    %2 = arith.andi %0, %1 : i1
    %c7_i32 = arith.constant 7 : i32
    %3 = arith.cmpi eq, %arg0, %c7_i32 : i32
    %c0_i32_1 = arith.constant 0 : i32
    %4 = arith.cmpi eq, %arg1, %c0_i32_1 : i32
    %5 = arith.andi %3, %4 : i1
    %6 = arith.extui %2 : i1 to i32
    %c0_i32_2 = arith.constant 0 : i32
    %7 = arith.cmpi ne, %6, %c0_i32_2 : i32
    scf.if %7 {
      %cst_19 = arith.constant 0.000000e+00 : f32
      %41 = vector.broadcast %cst_19 : f32 to vector<1x1xf32>
      %c0_20 = arith.constant 0 : index
      %c0_21 = arith.constant 0 : index
      %42 = vector.load %arg4[%c0_20, %c0_21] : memref<1x1xf32, #tpu.memory_space<vmem>>, vector<1x1xf32>
      tpu.vector_store %arg4[%c0_20, %c0_21], %41 {strides = array<i32>} : memref<1x1xf32, #tpu.memory_space<vmem>>, vector<1x1xf32>,
      %cst_22 = arith.constant 0.000000e+00 : f32
      %43 = vector.broadcast %cst_22 : f32 to vector<1x1xf32>
      %c0_23 = arith.constant 0 : index
      %c0_24 = arith.constant 0 : index
      %44 = vector.load %arg5[%c0_23, %c0_24] : memref<1x1xf32, #tpu.memory_space<vmem>>, vector<1x1xf32>
      tpu.vector_store %arg5[%c0_23, %c0_24], %43 {strides = array<i32>} : memref<1x1xf32, #tpu.memory_space<vmem>>, vector<1x1xf32>,
    } else {
    }
    %c0 = arith.constant 0 : index
    %c0_3 = arith.constant 0 : index
    %c0_4 = arith.constant 0 : index
    %8 = vector.load %arg2[%c0, %c0_3, %c0_4] : memref<1x16x16xf32, #tpu.memory_space<vmem>>, vector<1x16x16xf32>
    %9 = vector.shape_cast %8 : vector<1x16x16xf32> to vector<16x16xf32>
    %c0_5 = arith.constant 0 : index
    %c0_6 = arith.constant 0 : index
    %10 = vector.load %arg4[%c0_5, %c0_6] : memref<1x1xf32, #tpu.memory_space<vmem>>, vector<1x1xf32>
    %11 = vector.extract_strided_slice %9 {offsets = [0, 0], sizes = [16, 15], strides = [1, 1]} : vector<16x16xf32> to vector<16x15xf32>
    %12 = vector.extract_strided_slice %9 {offsets = [0, 1], sizes = [16, 15], strides = [1, 1]} : vector<16x16xf32> to vector<16x15xf32>
    %13 = arith.subf %11, %12 : vector<16x15xf32>
    %14 = math.absf %13 : vector<16x15xf32>
    %15 = vector.shape_cast %14 : vector<16x15xf32> to vector<1x16x15xf32>
    %cst = arith.constant dense<0.000000e+00> : vector<1xf32>
    %16 = vector.multi_reduction <add>, %15, %cst [1, 2] : vector<1x16x15xf32> to vector<1xf32>
    %17 = vector.shape_cast %16 : vector<1xf32> to vector<1x1x1xf32>
    %18 = vector.extract %17[0, 0, 0] : f32 from vector<1x1x1xf32>
    %19 = vector.broadcast %18 : f32 to vector<1x1xf32>
    %20 = arith.addf %10, %19 : vector<1x1xf32>
    %c0_7 = arith.constant 0 : index
    %c0_8 = arith.constant 0 : index
    %21 = vector.load %arg4[%c0_7, %c0_8] : memref<1x1xf32, #tpu.memory_space<vmem>>, vector<1x1xf32>
    tpu.vector_store %arg4[%c0_7, %c0_8], %20 {strides = array<i32>} : memref<1x1xf32, #tpu.memory_space<vmem>>, vector<1x1xf32>,
    %c0_9 = arith.constant 0 : index
    %c0_10 = arith.constant 0 : index
    %22 = vector.load %arg5[%c0_9, %c0_10] : memref<1x1xf32, #tpu.memory_space<vmem>>, vector<1x1xf32>
    %23 = vector.extract_strided_slice %9 {offsets = [0, 0], sizes = [15, 16], strides = [1, 1]} : vector<16x16xf32> to vector<15x16xf32>
    %24 = vector.extract_strided_slice %9 {offsets = [1, 0], sizes = [15, 16], strides = [1, 1]} : vector<16x16xf32> to vector<15x16xf32>
    %25 = arith.subf %23, %24 : vector<15x16xf32>
    %26 = math.absf %25 : vector<15x16xf32>
    %27 = vector.shape_cast %26 : vector<15x16xf32> to vector<1x15x16xf32>
    %cst_11 = arith.constant dense<0.000000e+00> : vector<1xf32>
    %28 = vector.multi_reduction <add>, %27, %cst_11 [1, 2] : vector<1x15x16xf32> to vector<1xf32>
    %29 = vector.shape_cast %28 : vector<1xf32> to vector<1x1x1xf32>
    %30 = vector.extract %29[0, 0, 0] : f32 from vector<1x1x1xf32>
    %31 = vector.broadcast %30 : f32 to vector<1x1xf32>
    %32 = arith.addf %22, %31 : vector<1x1xf32>
    %c0_12 = arith.constant 0 : index
    %c0_13 = arith.constant 0 : index
    %33 = vector.load %arg5[%c0_12, %c0_13] : memref<1x1xf32, #tpu.memory_space<vmem>>, vector<1x1xf32>
    tpu.vector_store %arg5[%c0_12, %c0_13], %32 {strides = array<i32>} : memref<1x1xf32, #tpu.memory_space<vmem>>, vector<1x1xf32>,
    %c0_i32_14 = arith.constant 0 : i32
    %34 = arith.cmpi sgt, %arg1, %c0_i32_14 : i32
    %35 = arith.extui %34 : i1 to i32
    %c0_i32_15 = arith.constant 0 : i32
    %36 = arith.cmpi ne, %35, %c0_i32_15 : i32
    scf.if %36 {
      %c0_19 = arith.constant 0 : index
      %c0_20 = arith.constant 0 : index
      %41 = vector.load %arg5[%c0_19, %c0_20] : memref<1x1xf32, #tpu.memory_space<vmem>>, vector<1x1xf32>
      %c0_21 = arith.constant 0 : index
      %c0_22 = arith.constant 0 : index
      %42 = vector.load %arg6[%c0_21, %c0_22] : memref<1x16xf32, #tpu.memory_space<vmem>>, vector<1x16xf32>
      %43 = vector.extract_strided_slice %9 {offsets = [0, 0], sizes = [1, 16], strides = [1, 1]} : vector<16x16xf32> to vector<1x16xf32>
      %44 = arith.subf %42, %43 : vector<1x16xf32>
      %45 = math.absf %44 : vector<1x16xf32>
      %46 = vector.shape_cast %45 : vector<1x16xf32> to vector<1x1x16xf32>
      %cst_23 = arith.constant dense<0.000000e+00> : vector<1xf32>
      %47 = vector.multi_reduction <add>, %46, %cst_23 [1, 2] : vector<1x1x16xf32> to vector<1xf32>
      %48 = vector.shape_cast %47 : vector<1xf32> to vector<1x1x1xf32>
      %49 = vector.extract %48[0, 0, 0] : f32 from vector<1x1x1xf32>
      %50 = vector.broadcast %49 : f32 to vector<1x1xf32>
      %51 = arith.addf %41, %50 : vector<1x1xf32>
      %c0_24 = arith.constant 0 : index
      %c0_25 = arith.constant 0 : index
      %52 = vector.load %arg5[%c0_24, %c0_25] : memref<1x1xf32, #tpu.memory_space<vmem>>, vector<1x1xf32>
      tpu.vector_store %arg5[%c0_24, %c0_25], %51 {strides = array<i32>} : memref<1x1xf32, #tpu.memory_space<vmem>>, vector<1x1xf32>,
    } else {
    }
    %37 = vector.extract_strided_slice %9 {offsets = [15, 0], sizes = [1, 16], strides = [1, 1]} : vector<16x16xf32> to vector<1x16xf32>
    %c0_16 = arith.constant 0 : index
    %c0_17 = arith.constant 0 : index
    %38 = vector.load %arg6[%c0_16, %c0_17] : memref<1x16xf32, #tpu.memory_space<vmem>>, vector<1x16xf32>
    tpu.vector_store %arg6[%c0_16, %c0_17], %37 {strides = array<i32>} : memref<1x16xf32, #tpu.memory_space<vmem>>, vector<1x16xf32>,
    %39 = arith.extui %5 : i1 to i32
    %c0_i32_18 = arith.constant 0 : i32
    %40 = arith.cmpi ne, %39, %c0_i32_18 : i32
    scf.if %40 {
      %c0_19 = arith.constant 0 : index
      %c0_20 = arith.constant 0 : index
      %41 = vector.load %arg4[%c0_19, %c0_20] : memref<1x1xf32, #tpu.memory_space<vmem>>, vector<1x1xf32>
      %c0_21 = arith.constant 0 : index
      %c0_22 = arith.constant 0 : index
      %42 = vector.load %arg5[%c0_21, %c0_22] : memref<1x1xf32, #tpu.memory_space<vmem>>, vector<1x1xf32>
      %43 = arith.mulf %41, %41 : vector<1x1xf32>
      %44 = arith.mulf %42, %42 : vector<1x1xf32>
      %45 = arith.addf %43, %44 : vector<1x1xf32>
      %46 = math.sqrt %45 : vector<1x1xf32>
      %c0_23 = arith.constant 0 : index
      %c0_24 = arith.constant 0 : index
      %47 = vector.load %arg3[%c0_23, %c0_24] : memref<1x1xf32, #tpu.memory_space<vmem>>, vector<1x1xf32>
      tpu.vector_store %arg3[%c0_23, %c0_24], %46 {strides = array<i32>} : memref<1x1xf32, #tpu.memory_space<vmem>>, vector<1x1xf32>,
    } else {
    }
    return
  }
  func.func @transform_0(%arg0: i32, %arg1: i32) -> (i32, i32, i32) {
    %c0_i32 = arith.constant 0 : i32
    %c0_i32_0 = arith.constant 0 : i32
    return %arg0, %arg1, %c0_i32 : i32, i32, i32
  }
  func.func @transform_1(%arg0: i32, %arg1: i32) -> (i32, i32) {
    %c0_i32 = arith.constant 0 : i32
    %c0_i32_0 = arith.constant 0 : i32
    %c0_i32_1 = arith.constant 0 : i32
    return %c0_i32, %c0_i32_0 : i32, i32
  }
}

</mosaic_0001>

<llo_original>
// kernel: tpu_custom_call.1
$region0: #{tpu_custom_call.1}
  #allocation0 [shape = 'u32[]', space=smem, size = 0x4, offset = 0x4, fixed_abs, tag = 'smem constant byte address 0x4 - core index']
  #allocation1 [shape = 'u32[144,128]{1,0:T(1,128)}', space=vmem, size = 0x12000, scoped, tag = 'internal scratch']
  #allocation2 [shape = 'f32[1,1]{1,0:T(1,128)}', space=vmem, size = 0x200, scoped, tag = 'scratch operand']
  #allocation3 [shape = 'f32[1,1]{1,0:T(1,128)}', space=vmem, size = 0x200, scoped, tag = 'scratch operand']
  #allocation4 [shape = 'f32[1,16]{1,0:T(1,128)}', space=vmem, size = 0x200, scoped, tag = 'scratch operand']
  %s0 = inlined_call_operand.hbm [shape: f32[8,16,16], index: 0, kind: input, shape index: {}]
  %s1 = inlined_call_operand.hbm [shape: f32[1,1], index: 1, kind: output, shape index: {}]
  %s2 = sld [smem:[#allocation0]]
  $region53: #{tpu_custom_call.1} parent=0
    _
  %s4 = ssub.s32 1, %s2
  %s5 = scalar_select 0, %s4, %s2
  $region1: #{tpu_custom_call.1} parent=0
    #allocation5 [shape = 'u8[16384]{0}', space=vmem, size = 0x4000, scoped, tag = 'input window, operand 0']
    #allocation6 [shape = 's32[2]{0}', space=sflag, size = 0x8, scoped, tag = 'scoped memory for tpu_custom_call.1']
    #allocation7 [shape = 's32[2]{0}', space=sflag, size = 0x8, scoped, tag = 'scoped memory for tpu_custom_call.1']
    #allocation8 [shape = 'u8[512]{0}', space=vmem, size = 0x400, scoped, tag = 'output window, operand 0, single buffered']
    %6 = vsyncpa [#allocation6], 0
    %s7 = scalar_lea.sflag [#allocation6], 1
    %8 = vsyncpa %s7, 0
    %9 = vsyncpa [#allocation7], 0
    loop: start=0, step=1, limit=10
    $region2: #{tpu_custom_call.1} parent=1 // loop_pre_header
      _
    $region3: #{tpu_custom_call.1} parent=1 // loop_header
      %s11 = sphi 0, %s15
      %p12 = scmp.ge.s32.totalorder %s11, 10
      %s18 = sphi 0, %s30
      %s19 = sphi 0, %s26
      %s20 = sphi 0, %s18
      %s21 = sphi 0, %s19
      %s22 = sphi 0, %s20
      %s23 = sphi 0, %s21
      %s35 = sphi 0, %s37
      %s38 = sphi 0, %s35
      %s39 = sphi 0, %s38
      %s55 = sphi 0, %s39
      %s59 = sphi 0, %s59
      %s61 = sphi 0, %s59
      %s62 = sphi 0, %s61
      %s76 = sphi 0, %s62
    $region4: #{tpu_custom_call.1} parent=1 // loop_header_branch
      %14 = sbr.rel (%p12) target = $region8
    $region5: #{tpu_custom_call.1} parent=1 // loop_body
      %s16 = ssub.s32 %s11, 1
      %s17 = ssub.s32 %s11, 2
      %s24 = sadd.s32 1, %s19
      %p25 = scmp.ge.s32.totalorder %s24, 1
      %s26 = scalar_select %p25, 0, %s24
      %s27 = sadd.s32 1, %s18
      %s28 = scalar_select %p25, %s27, %s18
      %p29 = scmp.ge.s32.totalorder %s28, 8
      %s30 = scalar_select %p29, 0, %s28
      %s31 = ssub.s32 %s18, %s30
      %s32 = ssub.s32 %s19, %s26
      %s33 = sor.u32 %s31, %s32
      %p34 = scmp.eq.s32.totalorder %s33, 0
      %s36 = sadd.s32 %s35, 1
      %s37 = scalar_select %p34, %s35, %s36
      %p40 = pneg %p34
      %p41 = scmp.eq.s32.totalorder %s11, 7
      %p42 = por %p40, %p41
      %p43 = scmp.ne.s32.totalorder %s35, %s38
      %p44 = scmp.eq.s32.totalorder %s11, 0
      %p45 = por %p43, %p44
      %p46 = scmp.ne.s32.totalorder %s35, %s38
      %p47 = scmp.eq.s32.totalorder %s16, 7
      %p48 = por %p46, %p47
      %p49 = scmp.ne.s32.totalorder %s38, %s39
      %p50 = scmp.eq.s32.totalorder %s16, 0
      %p51 = por %p49, %p50
      %p52 = scmp.ne.s32.totalorder %s38, %s39
      %p53 = scmp.eq.s32.totalorder %s17, 7
      %p54 = por %p52, %p53
      %p56 = scmp.ne.s32.totalorder %s39, %s55
      %p57 = scmp.eq.s32.totalorder %s17, 0
      %p58 = por %p56, %p57
      %s60 = sadd.s32 %s59, 1
      %p63 = scmp.eq.s32.totalorder %s11, 7
      %p64 = scmp.ne.s32.totalorder %s59, %s61
      %p65 = scmp.eq.s32.totalorder %s11, 0
      %p66 = por %p64, %p65
      %p67 = scmp.ne.s32.totalorder %s59, %s61
      %p68 = scmp.eq.s32.totalorder %s16, 7
      %p69 = por %p67, %p68
      %p70 = scmp.ne.s32.totalorder %s61, %s62
      %p71 = scmp.eq.s32.totalorder %s16, 0
      %p72 = por %p70, %p71
      %p73 = scmp.ne.s32.totalorder %s61, %s62
      %p74 = scmp.eq.s32.totalorder %s17, 7
      %p75 = por %p73, %p74
      %p77 = scmp.ne.s32.totalorder %s62, %s76
      %p78 = scmp.eq.s32.totalorder %s17, 0
      %p79 = por %p77, %p78
      %p80 = scmp.le.s32.totalorder 1, %s11
      %p81 = scmp.lt.s32.totalorder %s11, 9
      %p82 = pnand %p80, %p81
      %p83 = pneg %p82
      // Predicated region
      $region9: #{tpu_custom_call.1} parent=5 // pred_check
        _
      $region10: #{tpu_custom_call.1} parent=5 // pred_check_branch
        %85 = sbr.rel (%p82) target = $region12
      $region11: #{tpu_custom_call.1} parent=5 // pred_region
        %s86 = ssub.s32 %s11, 1
      $region12: #{tpu_custom_call.1} parent=5 // pred_fallthru
        _
      %p87 = scmp.lt.s32.totalorder %s11, 8
      // Predicated region
      $region13: #{tpu_custom_call.1} parent=5 // pred_check
        %p88 = pneg %p87
      $region14: #{tpu_custom_call.1} parent=5 // pred_check_branch
        %90 = sbr.rel (%p88) target = $region16
      $region15: #{tpu_custom_call.1} parent=5 // pred_region
        // Predicated region
        $region17: #{tpu_custom_call.1} parent=15 // pred_check
          %p91 = pneg %p45
        $region18: #{tpu_custom_call.1} parent=15 // pred_check_branch
          %93 = sbr.rel (%p91) target = $region20
        $region19: #{tpu_custom_call.1} parent=15 // pred_region
          %s94 = sand.u32 %s35, 1
          %s95 = scalar_lea.sflag [#allocation6], %s94
          %s96 = sand.u32 %s35, 1
          %s97 = smul.addr %s96, 16
          %s98 = scalar_lea.vmem [#allocation5], %s97
          %s99 = smul.u32 2, %s19
          %s101 = ssub.s32 256, 256
          %102 = vsyncadd %s95, %s101
          %s103 = smul.addr %s18, 2
          %s104 = sadd.s32 %s99, %s103
          %s105 = smul.addr %s104, 128
          %s106 = scalar_lea.hbm %s0, %s105
          %s107 = sshll.u32 %s98, 4
          %s108 = int_to_ptr.vmem [resolvable:$true] %s107
          %113 = dma.hbm_to_vmem [thread:$0]  %s106, 256, %s108, %s95, 128, 128, 8
        $region20: #{tpu_custom_call.1} parent=15 // pred_fallthru
          _
      $region16: #{tpu_custom_call.1} parent=5 // pred_fallthru
        _
      %p114 = scmp.le.s32.totalorder 1, %s11
      %p115 = scmp.lt.s32.totalorder %s11, 9
      %p116 = pnand %p114, %p115
      %p117 = pneg %p116
      // Predicated region
      $region21: #{tpu_custom_call.1} parent=5 // pred_check
        _
      $region22: #{tpu_custom_call.1} parent=5 // pred_check_branch
        %119 = sbr.rel (%p116) target = $region24
      $region23: #{tpu_custom_call.1} parent=5 // pred_region
        %s120 = ssub.s32 %s11, 1
        %s121 = sand.u32 %s38, 1
        %s122 = scalar_lea.sflag [#allocation6], %s121
        %s123 = sand.u32 %s38, 1
        %s124 = smul.addr %s123, 16
        %s125 = scalar_lea.vmem [#allocation5], %s124
        // Predicated region
        $region25: #{tpu_custom_call.1} parent=23 // pred_check
          %p126 = pneg %p51
        $region26: #{tpu_custom_call.1} parent=23 // pred_check_branch
          %128 = sbr.rel (%p126) target = $region28
        $region27: #{tpu_custom_call.1} parent=23 // pred_region
          %129 = dma.done %s122, 256
        $region28: #{tpu_custom_call.1} parent=23 // pred_fallthru
          _
        %s130 = sand.u32 %s38, 1
        %s131 = scalar_lea.sflag [#allocation6], %s130
        %s132 = sand.u32 %s38, 1
        %s133 = smul.addr %s132, 16
        %s134 = scalar_lea.vmem [#allocation5], %s133
        %p135 = pneg %p51
        %p136 = pneg %p48
        %p137 = pneg %p72
        %p138 = pneg %p69
        %s139 = smul.u32 2, %s21
        %p140 = scmp.eq.s32.totalorder %s20, 0
        %p141 = scmp.eq.s32.totalorder %s21, 0
        %p142 = pnand %p140, %p141
        %p143 = pneg %p142
        %p144 = scmp.eq.s32.totalorder %s20, 7
        %p145 = pnand %p144, %p141
        %p146 = pneg %p145
        // Predicated region
        $region29: #{tpu_custom_call.1} parent=23 // pred_check
          _
        $region30: #{tpu_custom_call.1} parent=23 // pred_check_branch
          %148 = sbr.rel (%p142) target = $region32
        $region31: #{tpu_custom_call.1} parent=23 // pred_region
          %vm149 = vcmask 0
          %150 = vst.msk [vmem:[#allocation2] sm:$0x1] %vm149, 0.0
          %151 = vst.msk [vmem:[#allocation3] sm:$0x1] %vm149, 0.0
        $region32: #{tpu_custom_call.1} parent=23 // pred_fallthru
          _
        %v152 = vld [vmem:[%s125] sm:$0xff]
        %v153 = vld [vmem:[%s125 + $0x8] sm:$0xff]
        %v154 = vld [vmem:[#allocation2] sm:$0x1]
        %157 = vrot.lane.b32.xlu0 %v152, 127
        %v158 = vpop.permute.xlu0 %157
        %159 = vrot.lane.b32.xlu0 %v153, 127
        %v160 = vpop.permute.xlu0 %159
        %v163 = vsub.f32 %v152, %v158
        %v164 = vsub.f32 %v153, %v160
        %v165 = vand.u32 2147483647, %v163
        %v166 = vand.u32 2147483647, %v164
        %vm167 = vcmask 121856
        %v168 = vsel %vm167, %v165, 0.0
        %v169 = vsel %vm167, %v166, 0.0
        %v170 = vadd.f32 %v168, %v169
        %171 = vadd.xlane.f32.xlu0 %v170
        %v172 = vpop.xlane.xlu0 %171
        %v173 = vrot.slane %v172, 4
        %v174 = vadd.f32 %v172, %v173
        %v175 = vrot.slane %v174, 2
        %v176 = vadd.f32 %v174, %v175
        %v177 = vrot.slane %v176, 1
        %v178 = vadd.f32 %v176, %v177
        %s179 = vtos %v178
        %v180 = vstv %s179
        %v181 = vadd.f32 %v154, %v180
        %vm182 = vcmask 0
        %183 = vst.msk [vmem:[#allocation2] sm:$0x1] %vm182, %v181
        %v184 = vld [vmem:[#allocation3] sm:$0x1]
        %vm185 = vcmask 1046528
        %v186 = vrot.slane %v152, 1
        %v187 = vrot.slane %v153, 1
        %v188 = vsel %vm185, %v186, %v187
        %v191 = vsub.f32 %v152, %v188
        %v192 = vsub.f32 %v153, %v187
        %v193 = vand.u32 2147483647, %v191
        %v194 = vand.u32 2147483647, %v192
        %vm195 = vcmask 130048
        %v196 = vsel %vm195, %v193, 0.0
        %vm197 = vcmask 129024
        %v198 = vsel %vm197, %v194, 0.0
        %v199 = vadd.f32 %v196, %v198
        %200 = vadd.xlane.f32.xlu0 %v199
        %v201 = vpop.xlane.xlu0 %200
        %v202 = vrot.slane %v201, 4
        %v203 = vadd.f32 %v201, %v202
        %v204 = vrot.slane %v203, 2
        %v205 = vadd.f32 %v203, %v204
        %v206 = vrot.slane %v205, 1
        %v207 = vadd.f32 %v205, %v206
        %s208 = vtos %v207
        %v209 = vstv %s208
        %v210 = vadd.f32 %v184, %v209
        %211 = vst.msk [vmem:[#allocation3] sm:$0x1] %vm182, %v210
        %p212 = scmp.gt.s32.totalorder %s21, 0
        // Predicated region
        $region33: #{tpu_custom_call.1} parent=23 // pred_check
          %p213 = pneg %p212
        $region34: #{tpu_custom_call.1} parent=23 // pred_check_branch
          %215 = sbr.rel (%p213) target = $region36
        $region35: #{tpu_custom_call.1} parent=23 // pred_region
          %v216 = vld [vmem:[#allocation3] sm:$0x1]
          %v217 = vld [vmem:[#allocation4] sm:$0x1]
          %v218 = vsub.f32 %v217, %v152
          %v219 = vand.u32 2147483647, %v218
          %vm220 = vcmask 122880
          %v221 = vsel %vm220, %v219, 0.0
          %222 = vadd.xlane.f32.xlu0 %v221
          %v223 = vpop.xlane.xlu0 %222
          %v224 = vrot.slane %v223, 4
          %v225 = vadd.f32 %v223, %v224
          %v226 = vrot.slane %v225, 2
          %v227 = vadd.f32 %v225, %v226
          %v228 = vrot.slane %v227, 1
          %v229 = vadd.f32 %v227, %v228
          %s230 = vtos %v229
          %v231 = vstv %s230
          %v232 = vadd.f32 %v216, %v231
          %233 = vst.msk [vmem:[#allocation3] sm:$0x1] %vm182, %v232
        $region36: #{tpu_custom_call.1} parent=23 // pred_fallthru
          _
        %vm234 = vcmask 130055
        %235 = vst.msk [vmem:[#allocation4 - $0x7] sm:$0x80] %vm234, %v153
        // Predicated region
        $region37: #{tpu_custom_call.1} parent=23 // pred_check
          _
        $region38: #{tpu_custom_call.1} parent=23 // pred_check_branch
          %237 = sbr.rel (%p145) target = $region40
        $region39: #{tpu_custom_call.1} parent=23 // pred_region
          %v238 = vld [vmem:[#allocation2] sm:$0x1]
          %v239 = vld [vmem:[#allocation3] sm:$0x1]
          %v240 = vmul.f32 %v238, %v238
          %v241 = vmul.f32 %v239, %v239
          %v242 = vadd.f32 %v240, %v241
          %v243 = vrsqrt.pop %v242
          %v244 = vmul.f32 %v242, %v243
          %vm245 = vcmp.eq.f32.partialorder %v242, inf
          %v246 = vsel %vm245, %v242, %v244
          %vm247 = vcmp.eq.f32.partialorder %v242, 0.0
          %v248 = vand.u32 %v242, 2147483648
          %v249 = vsel %vm247, %v248, %v246
          %250 = vst.msk [vmem:[#allocation8] sm:$0x1] %vm182, %v249
        $region40: #{tpu_custom_call.1} parent=23 // pred_fallthru
          _
        // Predicated region
        $region41: #{tpu_custom_call.1} parent=23 // pred_check
          %p251 = pneg %p69
        $region42: #{tpu_custom_call.1} parent=23 // pred_check_branch
          %253 = sbr.rel (%p251) target = $region44
        $region43: #{tpu_custom_call.1} parent=23 // pred_region
          %s255 = ssub.s32 16, 16
          %256 = vsyncadd [#allocation7], %s255
          %s258 = sshll.u32 [#allocation8], 4
          %s259 = int_to_ptr.vmem [resolvable:$true] %s258
          %261 = dma.vmem_to_hbm [thread:$0]  %s259, 16, %s1, [#allocation7]
        $region44: #{tpu_custom_call.1} parent=23 // pred_fallthru
          _
        // Predicated region
        $region45: #{tpu_custom_call.1} parent=23 // pred_check
          %p262 = pneg %p69
        $region46: #{tpu_custom_call.1} parent=23 // pred_check_branch
          %264 = sbr.rel (%p262) target = $region48
        $region47: #{tpu_custom_call.1} parent=23 // pred_region
          %265 = dma.done [#allocation7], 16
        $region48: #{tpu_custom_call.1} parent=23 // pred_fallthru
          _
      $region24: #{tpu_custom_call.1} parent=5 // pred_fallthru
        _
      %p266 = scmp.le.s32.totalorder 2, %s11
      // Predicated region
      $region49: #{tpu_custom_call.1} parent=5 // pred_check
        %p267 = pneg %p266
      $region50: #{tpu_custom_call.1} parent=5 // pred_check_branch
        %269 = sbr.rel (%p267) target = $region52
      $region51: #{tpu_custom_call.1} parent=5 // pred_region
        %s270 = ssub.s32 %s11, 2
      $region52: #{tpu_custom_call.1} parent=5 // pred_fallthru
        _
    $region6: #{tpu_custom_call.1} parent=1 // loop_footer
      %s15 = sadd.s32 1, %s11
    $region7: #{tpu_custom_call.1} parent=1 // loop_footer_branch
      %10 = sbr.rel target = $region3
    $region8: #{tpu_custom_call.1} parent=1 // loop_exit
      _
    %271 = vsyncpa [#allocation6], 1
    %s272 = scalar_lea.sflag [#allocation6], 1
    %273 = vsyncpa %s272, 1
    %274 = vsyncpa [#allocation7], 1
    %s275 = scalar_lea.sflag [#allocation7], 1
    %276 = vsyncpa %s275, 1

</llo_original>
